<compile_context>
chip_gen: v5e
topology: v5e:2x2
jax: 0.10.0
libtpu: 0.0.40
codegen_flags: <defaults>
</compile_context>

<pallas_src>
import functools
import math

import jax
import jax.numpy as jnp
from jax.experimental import pallas as pl
from jax.experimental.pallas import tpu as pltpu

_LANES = 128


def _round_up(x, m):
    return ((x + m - 1) // m) * m


# ----------------------------------------------------------------------------------
# Parameter packing: done ONCE at init time, not in the forward hot path.
# ----------------------------------------------------------------------------------
def pack_projection_params(w_loc_t, b_loc, w_scale_t, b_scale):
    """Pack both Linear heads column-wise into one lane-padded slab.

    w_*_t : [K, out_flat]  (already transposed vs. torch Linear.weight)
    b_*   : [1, out_flat]

    Returns:
      w_packed : [K, n_fused]  bf16   lanes [0,out_flat)=loc, [out_flat,2*out_flat)=scale
      b_packed : [1, n_fused]  f32
      out_flat : int
    """
    K, out_flat = w_loc_t.shape
    n_fused = _round_up(2 * out_flat, _LANES)  # 128-lane-dense fused width
    w_packed = jnp.zeros((K, n_fused), jnp.float32)
    w_packed = w_packed.at[:, :out_flat].set(w_loc_t)
    w_packed = w_packed.at[:, out_flat:2 * out_flat].set(w_scale_t)
    b_packed = jnp.zeros((1, n_fused), jnp.float32)
    b_packed = b_packed.at[:, :out_flat].set(b_loc)
    b_packed = b_packed.at[:, out_flat:2 * out_flat].set(b_scale)
    return w_packed.astype(jnp.bfloat16), b_packed, out_flat


# ----------------------------------------------------------------------------------
# Kernel: one MXU dot for both heads + masked softplus on the scale lanes.
# ----------------------------------------------------------------------------------
def _proj_kernel(x_ref, w_ref, b_ref, out_ref, *, out_flat):
    """
    x_ref   : [TB, K]        f32   (cast to bf16 in-kernel, free under the MXU)
    w_ref   : [K, n_fused]   bf16  lanes [0,out_flat)=loc, [out_flat,2*out_flat)=scale
    b_ref   : [1, n_fused]   f32
    out_ref : [TB, n_fused]  f32   single lane-dense output slab
    """
    x_bf = x_ref[...].astype(jnp.bfloat16)
    y = jnp.dot(x_bf, w_ref[...], preferred_element_type=jnp.float32) + b_ref[...]

    # Lane mask: softplus applies only to the scale head's lanes.
    lane = jax.lax.broadcasted_iota(jnp.int32, y.shape, dimension=1)
    is_scale = (lane >= out_flat) & (lane < 2 * out_flat)

    # Numerically-stable softplus (domain_map for Normal's scale); exp/log1p go to the
    # otherwise-idle EUP slot.  Clamp to the smallest positive f32 normal so the
    # Normal scale stays strictly positive (torch would error on scale==0).
    sp = jnp.log1p(jnp.exp(-jnp.abs(y))) + jnp.maximum(y, 0.0)
    sp = jnp.maximum(sp, jnp.finfo(jnp.float32).tiny)

    out_ref[...] = jnp.where(is_scale, sp, y)


# ----------------------------------------------------------------------------------
# Forward: the hot path.  Only batch padding (if needed) + one pallas_call + slices.
# ----------------------------------------------------------------------------------
def projection_layer_forward(x, w_packed, b_packed, out_flat, output_shape):
    """
    x           : [B, in_features]  f32
    w_packed    : [in_features, n_fused]  bf16  (from pack_projection_params)
    b_packed    : [1, n_fused]            f32
    output_shape: tuple, e.g. (n_prediction_steps, num_targets)

    Returns (loc, scale), each of shape (B, *output_shape) -- the Normal params.
    """
    B, K = x.shape
    n_fused = w_packed.shape[1]

    # Batch tile: big tiles amortize per-step overhead; when B > 8 ensure >= 2 grid
    # steps so v7x's two TensorCores both get work via the "parallel" axis.
    if B > 8:
        tb = min(512, _round_up(pl.cdiv(B, 2), 8))
    else:
        tb = _round_up(B, 8)
    b_pad = _round_up(B, tb)
    x_in = x
    if b_pad != B:
        x_in = jnp.zeros((b_pad, K), x.dtype).at[:B].set(x)
    nb = b_pad // tb

    kernel = functools.partial(_proj_kernel, out_flat=out_flat)

    fused = pl.pallas_call(
        kernel,
        out_shape=jax.ShapeDtypeStruct((b_pad, n_fused), jnp.float32),
        grid=(nb,),
        in_specs=[
            pl.BlockSpec((tb, K), lambda i: (i, 0)),         # x: tiled over batch
            pl.BlockSpec((K, n_fused), lambda i: (0, 0)),    # packed weight: resident
            pl.BlockSpec((1, n_fused), lambda i: (0, 0)),    # packed bias: resident
        ],
        out_specs=pl.BlockSpec((tb, n_fused), lambda i: (i, 0)),
        compiler_params=pltpu.CompilerParams(
            dimension_semantics=("parallel",),
        ),
    )(x_in, w_packed, b_packed)

    # Strip padding; nn.Unflatten(-1, (*output_shape, 1)) + squeeze(-1) of domain_map.
    loc = fused[:B, :out_flat].reshape(B, *output_shape, 1).squeeze(-1)
    scale = fused[:B, out_flat:2 * out_flat].reshape(B, *output_shape, 1).squeeze(-1)
    return loc, scale


def _init_linear(key, in_features, out_features):
    """Deterministic torch.nn.Linear-style init: U(-1/sqrt(fan_in), 1/sqrt(fan_in))."""
    kw, kb = jax.random.split(key)
    bound = 1.0 / math.sqrt(in_features)
    # torch stores weight as [out, in]; we keep [in, out] (pre-transposed) for the kernel.
    w_t = jax.random.uniform(kw, (in_features, out_features), jnp.float32, -bound, bound)
    b = jax.random.uniform(kb, (1, out_features), jnp.float32, -bound, bound)
    return w_t, b


if __name__ == "__main__":
    # Module hyperparameters (decoder_has_local_layer=True branch)
    batch = 8
    num_in_features = 32
    n_prediction_steps = 6
    num_targets = 2
    output_shape = (n_prediction_steps, num_targets)
    arg_dim = 1  # Normal: {"loc": 1, "scale": 1}
    out_flat = n_prediction_steps * num_targets * arg_dim

    key = jax.random.PRNGKey(0)
    k_x, k_loc, k_scale = jax.random.split(key, 3)

    x = jax.random.normal(k_x, (batch, num_in_features), jnp.float32)
    w_loc_t, b_loc = _init_linear(k_loc, num_in_features, out_flat)
    w_scale_t, b_scale = _init_linear(k_scale, num_in_features, out_flat)

    # Pack once at init time (hoisted out of the forward hot path).
    w_packed, b_packed, packed_out_flat = pack_projection_params(
        w_loc_t, b_loc, w_scale_t, b_scale
    )
    w_packed, b_packed = jax.block_until_ready((w_packed, b_packed))

    loc, scale = projection_layer_forward(
        x, w_packed, b_packed, packed_out_flat, output_shape
    )
    jax.block_until_ready((loc, scale))

    # Reference with the same bf16 operand cast (tight tolerance) ...
    xb = x.astype(jnp.bfloat16)
    loc_ref_bf = (
        jnp.dot(xb, w_loc_t.astype(jnp.bfloat16), preferred_element_type=jnp.float32)
        + b_loc
    ).reshape(batch, *output_shape)
    scale_ref_bf = jax.nn.softplus(
        jnp.dot(xb, w_scale_t.astype(jnp.bfloat16), preferred_element_type=jnp.float32)
        + b_scale
    ).reshape(batch, *output_shape)
    # ... and the full-f32 reference (loose tolerance, bf16 rounding of operands only).
    loc_ref_f32 = (x @ w_loc_t + b_loc).reshape(batch, *output_shape)
    scale_ref_f32 = jax.nn.softplus(x @ w_scale_t + b_scale).reshape(batch, *output_shape)

    assert loc.shape == (batch, n_prediction_steps, num_targets)
    assert scale.shape == (batch, n_prediction_steps, num_targets)
    assert jnp.allclose(loc, loc_ref_bf, atol=1e-4, rtol=1e-4), "loc mismatch (bf16 ref)"
    assert jnp.allclose(scale, scale_ref_bf, atol=1e-4, rtol=1e-4), "scale mismatch (bf16 ref)"
    assert jnp.allclose(loc, loc_ref_f32, atol=5e-2, rtol=5e-2), "loc mismatch (f32 ref)"
    assert jnp.allclose(scale, scale_ref_f32, atol=5e-2, rtol=5e-2), "scale mismatch (f32 ref)"
    assert bool(jnp.all(scale > 0)), "scale must be positive (softplus domain map)"

    # TODO(synk): torch.distributions.Normal object construction has no Pallas
    # equivalent; we return its (loc, scale) parameter tensors instead.
    print("KERNEL_OK")
</pallas_src>

<mosaic_0001>
module attributes {stable_mosaic.version = 11 : i64} {
  func.func @_proj_kernel(%arg0: i32, %arg1: memref<8x32xf32, #tpu.memory_space<vmem>>, %arg2: memref<32x128xbf16, #tpu.memory_space<vmem>>, %arg3: memref<1x128xf32, #tpu.memory_space<vmem>>, %arg4: memref<8x128xf32, #tpu.memory_space<vmem>>) attributes {dimension_semantics = [#tpu.dimension_semantics<parallel>], iteration_bounds = array<i64: 1>, scalar_prefetch = 0 : i64, scratch_operands = 0 : i64, tpu.core_type = #tpu.core_type<tc>, window_params = [{transform_indices = @transform_0, window_bounds = array<i64: 8, 32>}, {pipeline_mode = #tpu.pipeline_mode<synchronous>, transform_indices = @transform_1, window_bounds = array<i64: 32, 128>}, {pipeline_mode = #tpu.pipeline_mode<synchronous>, transform_indices = @transform_2, window_bounds = array<i64: 1, 128>}, {transform_indices = @transform_3, window_bounds = array<i64: 8, 128>}]} {
    %c0 = arith.constant 0 : index
    %c0_0 = arith.constant 0 : index
    %0 = vector.load %arg1[%c0, %c0_0] : memref<8x32xf32, #tpu.memory_space<vmem>>, vector<8x32xf32>
    %1 = arith.truncf %0 : vector<8x32xf32> to vector<8x32xbf16>
    %c0_1 = arith.constant 0 : index
    %c0_2 = arith.constant 0 : index
    %2 = vector.load %arg2[%c0_1, %c0_2] : memref<32x128xbf16, #tpu.memory_space<vmem>>, vector<32x128xbf16>
    %cst = arith.constant dense<0.000000e+00> : vector<8x128xf32>
    %3 = tpu.matmul %1, %2, %cst {dimension_numbers = #tpu.dot_dimension_numbers<[1], [0], [0], [1], [0, 0, 1, 1], [], []>} : vector<8x32xbf16>, vector<32x128xbf16>, vector<8x128xf32> -> vector<8x128xf32>
    %c0_3 = arith.constant 0 : index
    %c0_4 = arith.constant 0 : index
    %4 = vector.load %arg3[%c0_3, %c0_4] : memref<1x128xf32, #tpu.memory_space<vmem>>, vector<1x128xf32>
    %5 = vector.broadcast %4 : vector<1x128xf32> to vector<8x128xf32>
    %6 = arith.addf %3, %5 : vector<8x128xf32>
    %7 = tpu.iota {dimensions = array<i32: 1>} : vector<8x128xi32>
    %c12_i32 = arith.constant 12 : i32
    %8 = vector.broadcast %c12_i32 : i32 to vector<8x128xi32>
    %9 = arith.cmpi sge, %7, %8 : vector<8x128xi32>
    %c24_i32 = arith.constant 24 : i32
    %10 = vector.broadcast %c24_i32 : i32 to vector<8x128xi32>
    %11 = arith.cmpi slt, %7, %10 : vector<8x128xi32>
    %12 = arith.andi %9, %11 : vector<8x128xi1>
    %13 = math.absf %6 : vector<8x128xf32>
    %cst_5 = arith.constant 0.000000e+00 : f32
    %14 = vector.broadcast %cst_5 : f32 to vector<8x128xf32>
    %15 = arith.subf %14, %13 : vector<8x128xf32>
    %16 = math.exp %15 : vector<8x128xf32>
    %17 = math.log1p %16 : vector<8x128xf32>
    %cst_6 = arith.constant 0.000000e+00 : f32
    %18 = vector.broadcast %cst_6 : f32 to vector<8x128xf32>
    %19 = arith.maximumf %6, %18 : vector<8x128xf32>
    %20 = arith.addf %17, %19 : vector<8x128xf32>
    %cst_7 = arith.constant 1.17549435E-38 : f32
    %21 = vector.broadcast %cst_7 : f32 to vector<8x128xf32>
    %22 = arith.maximumf %20, %21 : vector<8x128xf32>
    %23 = arith.select %12, %22, %6 : vector<8x128xi1>, vector<8x128xf32>
    %c0_8 = arith.constant 0 : index
    %c0_9 = arith.constant 0 : index
    %24 = vector.load %arg4[%c0_8, %c0_9] : memref<8x128xf32, #tpu.memory_space<vmem>>, vector<8x128xf32>
    tpu.vector_store %arg4[%c0_8, %c0_9], %23 {strides = array<i32>} : memref<8x128xf32, #tpu.memory_space<vmem>>, vector<8x128xf32>,
    return
  }
  func.func @transform_0(%arg0: i32) -> (i32, i32) {
    %c0_i32 = arith.constant 0 : i32
    %c0_i32_0 = arith.constant 0 : i32
    return %arg0, %c0_i32 : i32, i32
  }
  func.func @transform_1(%arg0: i32) -> (i32, i32) {
    %c0_i32 = arith.constant 0 : i32
    %c0_i32_0 = arith.constant 0 : i32
    %c0_i32_1 = arith.constant 0 : i32
    return %c0_i32, %c0_i32_0 : i32, i32
  }
  func.func @transform_2(%arg0: i32) -> (i32, i32) {
    %c0_i32 = arith.constant 0 : i32
    %c0_i32_0 = arith.constant 0 : i32
    %c0_i32_1 = arith.constant 0 : i32
    return %c0_i32, %c0_i32_0 : i32, i32
  }
  func.func @transform_3(%arg0: i32) -> (i32, i32) {
    %c0_i32 = arith.constant 0 : i32
    %c0_i32_0 = arith.constant 0 : i32
    return %arg0, %c0_i32 : i32, i32
  }
}

</mosaic_0001>

<llo_original>
// kernel: tpu_custom_call.1
$region0: #{tpu_custom_call.1}
  #allocation0 [shape = 'u32[]', space=smem, size = 0x4, offset = 0x4, fixed_abs, tag = 'smem constant byte address 0x4 - core index']
  #allocation1 [shape = 'u32[72,128]{1,0:T(1,128)}', space=vmem, size = 0x9000, scoped, tag = 'internal scratch']
  %s0 = inlined_call_operand.hbm [shape: f32[8,32], index: 0, kind: input, shape index: {}]
  %s1 = inlined_call_operand.hbm [shape: bf16[32,128], index: 1, kind: input, shape index: {}]
  %s2 = inlined_call_operand.vmem [shape: f32[1,128], index: 2, kind: input, shape index: {}]
  %s3 = inlined_call_operand.hbm [shape: f32[8,128], index: 3, kind: output, shape index: {}]
  %s4 = sld [smem:[#allocation0]]
  $region30: #{tpu_custom_call.1} parent=0
    _
  %s6 = ssub.s32 1, %s4
  %s7 = scalar_select 0, %s6, %s4
  $region1: #{tpu_custom_call.1} parent=0
    #allocation2 [shape = 'u8[4096]{0}', space=vmem, size = 0x1000, scoped, tag = 'input window, operand 0, single buffered']
    #allocation3 [shape = 's32[1]{0}', space=sflag, size = 0x4, scoped, tag = 'scoped memory for tpu_custom_call.1']
    #allocation4 [shape = 's32[1]{0}', space=sflag, size = 0x4, scoped, tag = 'scoped memory for tpu_custom_call.1']
    #allocation5 [shape = 'u8[8192]{0}', space=vmem, size = 0x2000, scoped, tag = 'input window, operand 1, single buffered']
    #allocation6 [shape = 's32[1]{0}', space=sflag, size = 0x4, scoped, tag = 'scoped memory for tpu_custom_call.1']
    #allocation7 [shape = 'u8[4096]{0}', space=vmem, size = 0x1000, scoped, tag = 'output window, operand 0, single buffered']
    %8 = vsyncpa [#allocation3], 0
    %9 = vsyncpa [#allocation6], 0
    %10 = vsyncpa [#allocation4], 0
    // Predicated region
    $region2: #{tpu_custom_call.1} parent=1 // pred_check
      _
    $region3: #{tpu_custom_call.1} parent=1 // pred_check_branch
      %12 = sbr.rel (0) target = $region5
    $region4: #{tpu_custom_call.1} parent=1 // pred_region
      %14 = vsyncadd [#allocation3], 0
      %s16 = sshll.u32 %s0, 4
      %s17 = int_to_ptr.hbm [resolvable:$true] %s16
      %s18 = sshll.u32 [#allocation2], 4
      %s19 = int_to_ptr.vmem [resolvable:$true] %s18
      %21 = dma.hbm_to_vmem [thread:$0]  %s17, 128, %s19, [#allocation3]
    $region5: #{tpu_custom_call.1} parent=1 // pred_fallthru
      _
    // Predicated region
    $region6: #{tpu_custom_call.1} parent=1 // pred_check
      _
    $region7: #{tpu_custom_call.1} parent=1 // pred_check_branch
      %23 = sbr.rel (0) target = $region9
    $region8: #{tpu_custom_call.1} parent=1 // pred_region
      %25 = vsyncadd [#allocation6], 0
      %s26 = sshll.u32 %s1, 4
      %s27 = int_to_ptr.hbm [resolvable:$true] %s26
      %s28 = sshll.u32 [#allocation5], 4
      %s29 = int_to_ptr.vmem [resolvable:$true] %s28
      %34 = dma.hbm_to_vmem [thread:$0]  %s27, 256, %s29, [#allocation6], 64, 64, 4
    $region9: #{tpu_custom_call.1} parent=1 // pred_fallthru
      _
    // Predicated region
    $region10: #{tpu_custom_call.1} parent=1 // pred_check
      _
    $region11: #{tpu_custom_call.1} parent=1 // pred_check_branch
      %36 = sbr.rel (0) target = $region13
    $region12: #{tpu_custom_call.1} parent=1 // pred_region
      _
    $region13: #{tpu_custom_call.1} parent=1 // pred_fallthru
      _
    // Predicated region
    $region14: #{tpu_custom_call.1} parent=1 // pred_check
      _
    $region15: #{tpu_custom_call.1} parent=1 // pred_check_branch
      %38 = sbr.rel (0) target = $region17
    $region16: #{tpu_custom_call.1} parent=1 // pred_region
      %40 = dma.done [#allocation3], 128
    $region17: #{tpu_custom_call.1} parent=1 // pred_fallthru
      _
    // Predicated region
    $region18: #{tpu_custom_call.1} parent=1 // pred_check
      _
    $region19: #{tpu_custom_call.1} parent=1 // pred_check_branch
      %42 = sbr.rel (0) target = $region21
    $region20: #{tpu_custom_call.1} parent=1 // pred_region
      %44 = dma.done [#allocation6], 256
    $region21: #{tpu_custom_call.1} parent=1 // pred_fallthru
      _
    %v46 = vld [vmem:[#allocation2] sm:$0xff]
    %v47 = vpack.c.bf16 %v46, %v46
    %v48 = vld [vmem:[#allocation5] sm:$0xf]
    %v49 = vld [vmem:[#allocation5 + $0x4] sm:$0xf]
    %v50 = vld [vmem:[#allocation5 + $0x8] sm:$0xf]
    %v51 = vld [vmem:[#allocation5 + $0xc] sm:$0xf]
    %v52 = vld [vmem:[%s2] sm:$0x1]
    %v54 = vperm.slane %v52, 0
    %v60 = vunpack.c.l.b16 %v48
    %v61 = vunpack.c.l.b16 %v49
    %v62 = vunpack.c.l.b16 %v50
    %v63 = vunpack.c.l.b16 %v51
    %v64 = vpack.c.b16 %v61, %v60
    %v65 = vpack.c.b16 %v63, %v62
    %vm68 = vcmask 261120
    %v70 = vsel %vm68, %v47, 0
    %72 = vmatpush.bf16.msra.mxu0 0
    %73 = vmatpush.bf16.msra.mxu0 0
    %74 = vmatpush.bf16.msra.mxu0 0
    %75 = vmatpush.bf16.msra.mxu0 0
    %76 = vmatpush.bf16.msra.mxu0 0
    %77 = vmatpush.bf16.msra.mxu0 0
    %78 = vmatpush.bf16.msra.mxu0 %v65
    %79 = vmatpush.bf16.msra.mxu0 %v64
    %80 = vmatmul.bf16.gmra.mxu0 %v70
    %v81 = vpop.f32.mrf.mxu0
    %v82 = vadd.f32 %v54, %v81
    %v83 = vpop.f32.mrf.mxu0
    %84 = vdwg.mxu0
    %v85 = vlaneseq
    %v86 = vand.u32 %v85, 127
    %vm87 = vcmp.ge.s32.totalorder %v86, 12
    %vm88 = vcmp.lt.s32.totalorder %v86, 24
    %vm89 = vmand %vm87, %vm88
    %v90 = vand.u32 2147483647, %v82
    %v91 = vsub.f32 0.0, %v90
    %v92 = vmul.f32 %v91, 1.442695
    %v93 = vpow.pop %v92
    %v94 = vadd.f32 %v93, 1.0
    %v95 = vlog2.pop %v94
    %v96 = vmul.f32 %v95, 0.6931472
    %v97 = vmul.f32 -0.5, %v93
    %v98 = vadd.f32 %v97, 1.0
    %v99 = vmul.f32 %v98, %v93
    %v100 = vand.u32 2147483647, %v93
    %vm101 = vcmp.lt.f32.partialorder %v100, 0.0004427343
    %v102 = vsel %vm101, %v99, %v96
    %v103 = vmax.f32 %v82, 0.0
    %v104 = vadd.f32 %v102, %v103
    %v105 = vmax.f32 %v104, 1.1754944e-38
    %v106 = vsel %vm89, %v105, %v82
    %107 = vst [vmem:[#allocation7] sm:$0xff] %v106
    // Predicated region
    $region22: #{tpu_custom_call.1} parent=1 // pred_check
      _
    $region23: #{tpu_custom_call.1} parent=1 // pred_check_branch
      %109 = sbr.rel (0) target = $region25
    $region24: #{tpu_custom_call.1} parent=1 // pred_region
      %111 = vsyncadd [#allocation4], 0
      %s113 = sshll.u32 [#allocation7], 4
      %s114 = int_to_ptr.vmem [resolvable:$true] %s113
      %s115 = sshll.u32 %s3, 4
      %s116 = int_to_ptr.hbm [resolvable:$true] %s115
      %118 = dma.vmem_to_hbm [thread:$0]  %s114, 128, %s116, [#allocation4]
    $region25: #{tpu_custom_call.1} parent=1 // pred_fallthru
      _
    // Predicated region
    $region26: #{tpu_custom_call.1} parent=1 // pred_check
      _
    $region27: #{tpu_custom_call.1} parent=1 // pred_check_branch
      %120 = sbr.rel (0) target = $region29
    $region28: #{tpu_custom_call.1} parent=1 // pred_region
      %122 = dma.done [#allocation4], 128
    $region29: #{tpu_custom_call.1} parent=1 // pred_fallthru
      _
    %123 = vsyncpa [#allocation3], 1
    %124 = vsyncpa [#allocation6], 1
    %125 = vsyncpa [#allocation4], 1

</llo_original>
